<compile_context>
chip_gen: v7x
topology: tpu7x:2x2x1
jax: 0.10.0
libtpu: 0.0.40
codegen_flags: <defaults>
</compile_context>

<pallas_src>
import jax
import jax.numpy as jnp
from jax.experimental import pallas as pl
from jax.experimental.pallas import tpu as pltpu


# Below this many elements the kernel is pure launch/DMA overhead vs XLA fusion.
_SMALL_PROBLEM_ELEMS = 1 << 16


def _sem_decoder_kernel(adj_ref, rowsum_ref, wa_ref, z_ref, mat_z_ref, out_ref):
    # adj_ref:    (D, D)   inverse(I - A^T), VMEM-resident across all grid steps
    # rowsum_ref: (D, 1)   row sums of adj (hoisted Wa contribution), resident
    # wa_ref:     (1, TZ)  Wa slice for this lane tile
    # z_ref:      (D, TZ)  one batch element's lane tile of input_z (batch squeezed)
    # mat_z_ref:  (D, TZ)
    # out_ref:    (D, TZ)
    wa = wa_ref[...]                                            # (1, TZ) f32

    # adj @ (z + Wa) == adj @ z + rowsum(adj)[:, None] * Wa
    prod = jnp.dot(adj_ref[...], z_ref[...],
                   preferred_element_type=jnp.float32)          # MXU, f32 acc
    mat_z = prod + rowsum_ref[...] * wa                         # (D,1)*(1,TZ) FMA

    mat_z_ref[...] = mat_z.astype(mat_z_ref.dtype)
    out_ref[...] = (mat_z - wa).astype(out_ref.dtype)


def _vmem_limit_bytes():
    """Generation-aware VMEM limit (v5e/v6e: 128 MiB physical, v7x: 64 MiB)."""
    cap = 64 * 1024 * 1024
    try:
        info = pltpu.get_tpu_info()
        cap = int(getattr(info, "vmem_capacity_bytes", cap)) or cap
    except Exception:
        pass
    # Leave headroom for compiler scratch; cap at 96 MiB on big-VMEM parts.
    return min(int(cap * 3 // 4), 96 * 1024 * 1024)


def _choose_z_tile(D, Z, z_itemsize, vmem_limit):
    """Pick the lane tile TZ for the per-batch (D, Z) slab.

    TZ is either the full extent Z (small / non-128-aligned case) or a
    multiple of 128 chosen so that the double-buffered (in + 2 f32 out)
    tiles plus the resident adj/rowsum blocks fit comfortably in VMEM.
    """
    resident = 2 * D * D * 4 + 4 * D * 4 + 4 * 128 * 4     # adj (x2 bufs) + rowsum + wa
    budget = max(int(vmem_limit * 0.6) - resident, 1 << 20)
    per_col = 2 * D * (z_itemsize + 2 * 4)                 # double-buffered in + 2 f32 outs
    max_cols = max(128, budget // per_col)
    if Z <= max_cols:
        return Z                                           # single full-extent lane block
    tz = (max_cols // 128) * 128
    if Z % 128 == 0:
        while tz > 128 and Z % tz:                         # avoid partial tail blocks
            tz -= 128
    return tz


def linear_sem_decoder(input_z, origin_A, adj_A_tilt, Wa, *, force_pallas=False):
    """Pallas implementation of LinearSEMDecoder.forward.

    Args:
      input_z:    [B, D, Z] (f32 or bf16/f16; low-precision stays low-precision
                  into the MXU, accumulation is f32)
      origin_A:   [D, D]
      adj_A_tilt: passed through unchanged (as in the PyTorch module)
      Wa:         [Z] (or scalar)
      force_pallas: bypass the small-problem XLA fallback (used for testing).
    Returns:
      (mat_z, mat_z - Wa, adj_A_tilt)   with mat_z: f32[B, D, Z]
    """
    B, D, Z = input_z.shape

    # TODO(synk): matrix inverse (LAPACK-style solve) has no clean Pallas
    # equivalent; computed here in plain JAX as glue.
    eye = jnp.eye(D, dtype=jnp.float32)
    adj_f32 = jnp.linalg.inv(eye - origin_A.T.astype(jnp.float32))
    rowsum = jnp.sum(adj_f32, axis=1, keepdims=True)            # (D, 1) f32

    wa_vec = jnp.asarray(Wa, dtype=jnp.float32)
    wa_row = jnp.broadcast_to(jnp.reshape(wa_vec, (1, -1)), (1, Z))  # (1, Z)

    # Small-problem gate: the module's default shapes push a few hundred floats
    # through; kernel launch + DMA overhead dominates, so use plain XLA fusion.
    if (not force_pallas) and B * D * Z < _SMALL_PROBLEM_ELEMS:
        mat_z = jnp.einsum("ij,bjz->biz", adj_f32,
                           input_z.astype(jnp.float32) + wa_row[0])
        return mat_z, mat_z - wa_row[0], adj_A_tilt

    # MXU operand dtype: keep bf16/f16 inputs low precision (f32 accumulate),
    # otherwise compute in f32.
    if input_z.dtype in (jnp.bfloat16, jnp.float16):
        mxu_dtype = input_z.dtype
        z_in = input_z
    else:
        mxu_dtype = jnp.float32
        z_in = input_z.astype(jnp.float32)
    adj_mxu = adj_f32.astype(mxu_dtype)                         # tiny one-off cast

    vmem_limit = _vmem_limit_bytes()
    TZ = _choose_z_tile(D, Z, jnp.dtype(mxu_dtype).itemsize, vmem_limit)
    nz = pl.cdiv(Z, TZ)
    grid = (B, nz)   # batch leads: B >= 2 keeps both v7x TensorCores busy

    mat_z, out = pl.pallas_call(
        _sem_decoder_kernel,
        out_shape=(
            jax.ShapeDtypeStruct((B, D, Z), jnp.float32),
            jax.ShapeDtypeStruct((B, D, Z), jnp.float32),
        ),
        grid_spec=pltpu.PrefetchScalarGridSpec(
            num_scalar_prefetch=0,
            grid=grid,
            in_specs=[
                pl.BlockSpec((D, D), lambda b, zt: (0, 0)),          # adj (resident)
                pl.BlockSpec((D, 1), lambda b, zt: (0, 0)),          # rowsum (resident)
                pl.BlockSpec((1, TZ), lambda b, zt: (0, zt)),        # Wa row slice
                pl.BlockSpec((None, D, TZ), lambda b, zt: (b, 0, zt)),  # z block
            ],
            out_specs=[
                pl.BlockSpec((None, D, TZ), lambda b, zt: (b, 0, zt)),  # mat_z
                pl.BlockSpec((None, D, TZ), lambda b, zt: (b, 0, zt)),  # mat_z - Wa
            ],
        ),
        compiler_params=pltpu.CompilerParams(
            dimension_semantics=("parallel", "parallel"),
            vmem_limit_bytes=vmem_limit,
        ),
    )(adj_mxu, rowsum, wa_row, z_in)

    return mat_z, out, adj_A_tilt


if __name__ == "__main__":
    # Small shapes consistent with the module: batch=2, data_variable_size=8, n_out=16.
    B, D, Z = 2, 8, 16
    key = jax.random.PRNGKey(0)
    k1, k2, k3, k4 = jax.random.split(key, 4)

    input_z = jax.random.normal(k1, (B, D, Z), dtype=jnp.float32)
    # Keep origin_A small so (I - A^T) is well-conditioned, as in the SEM setting.
    origin_A = 0.1 * jax.random.normal(k2, (D, D), dtype=jnp.float32)
    adj_A_tilt = jax.random.normal(k3, (D, D), dtype=jnp.float32)
    Wa = jax.random.normal(k4, (Z,), dtype=jnp.float32)

    # Exercise the Pallas kernel path explicitly (the size gate would otherwise
    # route this tiny problem to the plain-XLA fallback).
    mat_z, out, adj_tilt_out = linear_sem_decoder(
        input_z, origin_A, adj_A_tilt, Wa, force_pallas=True)
    jax.block_until_ready((mat_z, out, adj_tilt_out))

    # Pure-JAX reference check of the forward semantics.
    adj_ref = jnp.linalg.inv(jnp.eye(D, dtype=jnp.float32) - origin_A.T)
    mat_z_ref = jnp.einsum("ij,bjz->biz", adj_ref, input_z + Wa)
    out_ref = mat_z_ref - Wa
    assert jnp.allclose(mat_z, mat_z_ref, atol=1e-4, rtol=1e-4)
    assert jnp.allclose(out, out_ref, atol=1e-4, rtol=1e-4)
    assert jnp.array_equal(adj_tilt_out, adj_A_tilt)

    # Sanity-check the small-problem fallback path as well.
    mz2, o2, _ = linear_sem_decoder(input_z, origin_A, adj_A_tilt, Wa)
    jax.block_until_ready((mz2, o2))
    assert jnp.allclose(mz2, mat_z_ref, atol=1e-4, rtol=1e-4)
    assert jnp.allclose(o2, out_ref, atol=1e-4, rtol=1e-4)

    print("KERNEL_OK")
</pallas_src>

<mosaic_0001>
module attributes {stable_mosaic.version = 11 : i64} {
  func.func @_sem_decoder_kernel(%arg0: i32, %arg1: i32, %arg2: memref<8x8xf32, #tpu.memory_space<vmem>>, %arg3: memref<8x1xf32, #tpu.memory_space<vmem>>, %arg4: memref<1x16xf32, #tpu.memory_space<vmem>>, %arg5: memref<1x8x16xf32, #tpu.memory_space<vmem>>, %arg6: memref<1x8x16xf32, #tpu.memory_space<vmem>>, %arg7: memref<1x8x16xf32, #tpu.memory_space<vmem>>) attributes {dimension_semantics = [#tpu.dimension_semantics<parallel>, #tpu.dimension_semantics<parallel>], iteration_bounds = array<i64: 2, 1>, scalar_prefetch = 0 : i64, scratch_operands = 0 : i64, tpu.core_type = #tpu.core_type<tc>, window_params = [{pipeline_mode = #tpu.pipeline_mode<synchronous>, transform_indices = @transform_0, window_bounds = array<i64: 8, 8>}, {pipeline_mode = #tpu.pipeline_mode<synchronous>, transform_indices = @transform_1, window_bounds = array<i64: 8, 1>}, {transform_indices = @transform_2, window_bounds = array<i64: 1, 16>}, {transform_indices = @transform_3, window_bounds = array<i64: 1, 8, 16>}, {transform_indices = @transform_4, window_bounds = array<i64: 1, 8, 16>}, {transform_indices = @transform_5, window_bounds = array<i64: 1, 8, 16>}]} {
    %c0 = arith.constant 0 : index
    %c0_0 = arith.constant 0 : index
    %0 = vector.load %arg4[%c0, %c0_0] : memref<1x16xf32, #tpu.memory_space<vmem>>, vector<1x16xf32>
    %c0_1 = arith.constant 0 : index
    %c0_2 = arith.constant 0 : index
    %1 = vector.load %arg2[%c0_1, %c0_2] : memref<8x8xf32, #tpu.memory_space<vmem>>, vector<8x8xf32>
    %c0_3 = arith.constant 0 : index
    %c0_4 = arith.constant 0 : index
    %c0_5 = arith.constant 0 : index
    %2 = vector.load %arg5[%c0_3, %c0_4, %c0_5] : memref<1x8x16xf32, #tpu.memory_space<vmem>>, vector<1x8x16xf32>
    %3 = vector.shape_cast %2 : vector<1x8x16xf32> to vector<8x16xf32>
    %cst = arith.constant dense<0.000000e+00> : vector<8x16xf32>
    %4 = tpu.matmul %1, %3, %cst {dimension_numbers = #tpu.dot_dimension_numbers<[1], [0], [0], [1], [0, 0, 1, 1], [], []>} : vector<8x8xf32>, vector<8x16xf32>, vector<8x16xf32> -> vector<8x16xf32>
    %c0_6 = arith.constant 0 : index
    %c0_7 = arith.constant 0 : index
    %5 = vector.load %arg3[%c0_6, %c0_7] : memref<8x1xf32, #tpu.memory_space<vmem>>, vector<8x1xf32>
    %6 = vector.broadcast %5 : vector<8x1xf32> to vector<8x16xf32>
    %7 = vector.broadcast %0 : vector<1x16xf32> to vector<8x16xf32>
    %8 = arith.mulf %6, %7 : vector<8x16xf32>
    %9 = arith.addf %4, %8 : vector<8x16xf32>
    %c0_8 = arith.constant 0 : index
    %c0_9 = arith.constant 0 : index
    %c0_10 = arith.constant 0 : index
    %10 = vector.load %arg6[%c0_8, %c0_9, %c0_10] : memref<1x8x16xf32, #tpu.memory_space<vmem>>, vector<1x8x16xf32>
    %11 = vector.shape_cast %10 : vector<1x8x16xf32> to vector<8x16xf32>
    %12 = vector.shape_cast %9 : vector<8x16xf32> to vector<1x8x16xf32>
    tpu.vector_store %arg6[%c0_8, %c0_9, %c0_10], %12 {strides = array<i32>} : memref<1x8x16xf32, #tpu.memory_space<vmem>>, vector<1x8x16xf32>,
    %13 = vector.broadcast %0 : vector<1x16xf32> to vector<8x16xf32>
    %14 = arith.subf %9, %13 : vector<8x16xf32>
    %c0_11 = arith.constant 0 : index
    %c0_12 = arith.constant 0 : index
    %c0_13 = arith.constant 0 : index
    %15 = vector.load %arg7[%c0_11, %c0_12, %c0_13] : memref<1x8x16xf32, #tpu.memory_space<vmem>>, vector<1x8x16xf32>
    %16 = vector.shape_cast %15 : vector<1x8x16xf32> to vector<8x16xf32>
    %17 = vector.shape_cast %14 : vector<8x16xf32> to vector<1x8x16xf32>
    tpu.vector_store %arg7[%c0_11, %c0_12, %c0_13], %17 {strides = array<i32>} : memref<1x8x16xf32, #tpu.memory_space<vmem>>, vector<1x8x16xf32>,
    return
  }
  func.func @transform_0(%arg0: i32, %arg1: i32) -> (i32, i32) {
    %c0_i32 = arith.constant 0 : i32
    %c0_i32_0 = arith.constant 0 : i32
    %c0_i32_1 = arith.constant 0 : i32
    return %c0_i32, %c0_i32_0 : i32, i32
  }
  func.func @transform_1(%arg0: i32, %arg1: i32) -> (i32, i32) {
    %c0_i32 = arith.constant 0 : i32
    %c0_i32_0 = arith.constant 0 : i32
    %c0_i32_1 = arith.constant 0 : i32
    return %c0_i32, %c0_i32_0 : i32, i32
  }
  func.func @transform_2(%arg0: i32, %arg1: i32) -> (i32, i32) {
    %c0_i32 = arith.constant 0 : i32
    %c0_i32_0 = arith.constant 0 : i32
    return %c0_i32, %arg1 : i32, i32
  }
  func.func @transform_3(%arg0: i32, %arg1: i32) -> (i32, i32, i32) {
    %c0_i32 = arith.constant 0 : i32
    %c0_i32_0 = arith.constant 0 : i32
    return %arg0, %c0_i32, %arg1 : i32, i32, i32
  }
  func.func @transform_4(%arg0: i32, %arg1: i32) -> (i32, i32, i32) {
    %c0_i32 = arith.constant 0 : i32
    %c0_i32_0 = arith.constant 0 : i32
    return %arg0, %c0_i32, %arg1 : i32, i32, i32
  }
  func.func @transform_5(%arg0: i32, %arg1: i32) -> (i32, i32, i32) {
    %c0_i32 = arith.constant 0 : i32
    %c0_i32_0 = arith.constant 0 : i32
    return %arg0, %c0_i32, %arg1 : i32, i32, i32
  }
}

</mosaic_0001>

<llo_original>
// kernel: tpu_custom_call.1
$region0: #{tpu_custom_call.1}
  #allocation0 [shape = 'u32[]', space=smem, size = 0x4, offset = 0x4, fixed_abs, tag = 'smem constant byte address 0x4 - core index']
  #allocation1 [shape = 'u32[144,128]{1,0:T(1,128)}', space=vmem, size = 0x12000, scoped, tag = 'internal scratch']
  %s0 = inlined_call_operand.hbm [shape: f32[8,8], index: 0, kind: input, shape index: {}]
  %s1 = inlined_call_operand.vmem [shape: f32[8,1], index: 1, kind: input, shape index: {}]
  %s2 = inlined_call_operand.vmem [shape: f32[1,16], index: 2, kind: input, shape index: {}]
  %s3 = inlined_call_operand.vmem [shape: f32[2,8,16], index: 3, kind: input, shape index: {}]
  %s4 = inlined_call_operand.hbm [shape: f32[2,8,16], index: 4, kind: output, shape index: {0}]
  %s5 = inlined_call_operand.hbm [shape: f32[2,8,16], index: 5, kind: output, shape index: {1}]
  %6 = xla_tuple %s4, %s5
  %s7 = sld [smem:[#allocation0]]
  $region61: #{tpu_custom_call.1} parent=0
    _
  %s9 = ssub.s32 1, %s7
  %s10 = scalar_select 0, %s9, %s7
  $region1: #{tpu_custom_call.1} parent=0
    #allocation2 [shape = 'u8[4096]{0}', space=vmem, size = 0x1000, scoped, tag = 'input window, operand 0, single buffered']
    #allocation3 [shape = 's32[2]{0}', space=sflag, size = 0x8, scoped, tag = 'scoped memory for tpu_custom_call.1']
    #allocation4 [shape = 's32[2]{0}', space=sflag, size = 0x8, scoped, tag = 'scoped memory for tpu_custom_call.1']
    #allocation5 [shape = 'u8[8192]{0}', space=vmem, size = 0x2000, scoped, tag = 'output window, operand 0']
    #allocation6 [shape = 'u8[8192]{0}', space=vmem, size = 0x2000, scoped, tag = 'output window, operand 1']
    #allocation7 [shape = 's32[2]{0}', space=sflag, size = 0x8, scoped, tag = 'scoped memory for tpu_custom_call.1']
    %11 = vsyncpa [#allocation3], 0
    %12 = vsyncpa [#allocation4], 0
    %s13 = scalar_lea.sflag [#allocation4], 1
    %14 = vsyncpa %s13, 0
    %15 = vsyncpa [#allocation7], 0
    %s16 = scalar_lea.sflag [#allocation7], 1
    %17 = vsyncpa %s16, 0
    loop: start=0, step=1, limit=4
    $region2: #{tpu_custom_call.1} parent=1 // loop_pre_header
      _
    $region3: #{tpu_custom_call.1} parent=1 // loop_header
      %s19 = sphi 0, %s23
      %p20 = scmp.ge.s32.totalorder %s19, 4
      %s26 = sphi 0, %s38
      %s27 = sphi 0, %s34
      %s28 = sphi 0, %s26
      %s29 = sphi 0, %s27
      %s30 = sphi 0, %s28
      %s31 = sphi 0, %s29
      %s39 = sphi 0, %s39
      %s41 = sphi 0, %s39
      %s42 = sphi 0, %s41
      %s56 = sphi 0, %s42
      %s60 = sphi 0, %s60
      %s62 = sphi 0, %s60
      %s63 = sphi 0, %s62
      %s77 = sphi 0, %s63
      %s83 = sphi 0, %s85
      %s86 = sphi 0, %s83
      %s87 = sphi 0, %s86
      %s103 = sphi 0, %s87
      %s111 = sphi 0, %s113
      %s114 = sphi 0, %s111
      %s115 = sphi 0, %s114
      %s131 = sphi 0, %s115
      %s139 = sphi 0, %s141
      %s142 = sphi 0, %s139
      %s143 = sphi 0, %s142
      %s159 = sphi 0, %s143
      %s167 = sphi 0, %s169
      %s170 = sphi 0, %s167
      %s171 = sphi 0, %s170
      %s187 = sphi 0, %s171
    $region4: #{tpu_custom_call.1} parent=1 // loop_header_branch
      %22 = sbr.rel (%p20) target = $region8
    $region5: #{tpu_custom_call.1} parent=1 // loop_body
      %s24 = ssub.s32 %s19, 1
      %s25 = ssub.s32 %s19, 2
      %s32 = sadd.s32 1, %s27
      %p33 = scmp.ge.s32.totalorder %s32, 1
      %s34 = scalar_select %p33, 0, %s32
      %s35 = sadd.s32 1, %s26
      %s36 = scalar_select %p33, %s35, %s26
      %p37 = scmp.ge.s32.totalorder %s36, 2
      %s38 = scalar_select %p37, 0, %s36
      %s40 = sadd.s32 %s39, 1
      %p43 = scmp.eq.s32.totalorder %s19, 1
      %p44 = scmp.ne.s32.totalorder %s39, %s41
      %p45 = scmp.eq.s32.totalorder %s19, 0
      %p46 = por %p44, %p45
      %p47 = scmp.ne.s32.totalorder %s39, %s41
      %p48 = scmp.eq.s32.totalorder %s24, 1
      %p49 = por %p47, %p48
      %p50 = scmp.ne.s32.totalorder %s41, %s42
      %p51 = scmp.eq.s32.totalorder %s24, 0
      %p52 = por %p50, %p51
      %p53 = scmp.ne.s32.totalorder %s41, %s42
      %p54 = scmp.eq.s32.totalorder %s25, 1
      %p55 = por %p53, %p54
      %p57 = scmp.ne.s32.totalorder %s42, %s56
      %p58 = scmp.eq.s32.totalorder %s25, 0
      %p59 = por %p57, %p58
      %s61 = sadd.s32 %s60, 1
      %p64 = scmp.eq.s32.totalorder %s19, 1
      %p65 = scmp.ne.s32.totalorder %s60, %s62
      %p66 = scmp.eq.s32.totalorder %s19, 0
      %p67 = por %p65, %p66
      %p68 = scmp.ne.s32.totalorder %s60, %s62
      %p69 = scmp.eq.s32.totalorder %s24, 1
      %p70 = por %p68, %p69
      %p71 = scmp.ne.s32.totalorder %s62, %s63
      %p72 = scmp.eq.s32.totalorder %s24, 0
      %p73 = por %p71, %p72
      %p74 = scmp.ne.s32.totalorder %s62, %s63
      %p75 = scmp.eq.s32.totalorder %s25, 1
      %p76 = por %p74, %p75
      %p78 = scmp.ne.s32.totalorder %s63, %s77
      %p79 = scmp.eq.s32.totalorder %s25, 0
      %p80 = por %p78, %p79
      %s81 = ssub.s32 %s27, %s34
      %p82 = scmp.eq.s32.totalorder %s81, 0
      %s84 = sadd.s32 %s83, 1
      %s85 = scalar_select %p82, %s83, %s84
      %p88 = pneg %p82
      %p89 = scmp.eq.s32.totalorder %s19, 1
      %p90 = por %p88, %p89
      %p91 = scmp.ne.s32.totalorder %s83, %s86
      %p92 = scmp.eq.s32.totalorder %s19, 0
      %p93 = por %p91, %p92
      %p94 = scmp.ne.s32.totalorder %s83, %s86
      %p95 = scmp.eq.s32.totalorder %s24, 1
      %p96 = por %p94, %p95
      %p97 = scmp.ne.s32.totalorder %s86, %s87
      %p98 = scmp.eq.s32.totalorder %s24, 0
      %p99 = por %p97, %p98
      %p100 = scmp.ne.s32.totalorder %s86, %s87
      %p101 = scmp.eq.s32.totalorder %s25, 1
      %p102 = por %p100, %p101
      %p104 = scmp.ne.s32.totalorder %s87, %s103
      %p105 = scmp.eq.s32.totalorder %s25, 0
      %p106 = por %p104, %p105
      %s107 = ssub.s32 %s26, %s38
      %s108 = ssub.s32 %s27, %s34
      %s109 = sor.u32 %s107, %s108
      %p110 = scmp.eq.s32.totalorder %s109, 0
      %s112 = sadd.s32 %s111, 1
      %s113 = scalar_select %p110, %s111, %s112
      %p116 = pneg %p110
      %p117 = scmp.eq.s32.totalorder %s19, 1
      %p118 = por %p116, %p117
      %p119 = scmp.ne.s32.totalorder %s111, %s114
      %p120 = scmp.eq.s32.totalorder %s19, 0
      %p121 = por %p119, %p120
      %p122 = scmp.ne.s32.totalorder %s111, %s114
      %p123 = scmp.eq.s32.totalorder %s24, 1
      %p124 = por %p122, %p123
      %p125 = scmp.ne.s32.totalorder %s114, %s115
      %p126 = scmp.eq.s32.totalorder %s24, 0
      %p127 = por %p125, %p126
      %p128 = scmp.ne.s32.totalorder %s114, %s115
      %p129 = scmp.eq.s32.totalorder %s25, 1
      %p130 = por %p128, %p129
      %p132 = scmp.ne.s32.totalorder %s115, %s131
      %p133 = scmp.eq.s32.totalorder %s25, 0
      %p134 = por %p132, %p133
      %s135 = ssub.s32 %s26, %s38
      %s136 = ssub.s32 %s27, %s34
      %s137 = sor.u32 %s135, %s136
      %p138 = scmp.eq.s32.totalorder %s137, 0
      %s140 = sadd.s32 %s139, 1
      %s141 = scalar_select %p138, %s139, %s140
      %p144 = pneg %p138
      %p145 = scmp.eq.s32.totalorder %s19, 1
      %p146 = por %p144, %p145
      %p147 = scmp.ne.s32.totalorder %s139, %s142
      %p148 = scmp.eq.s32.totalorder %s19, 0
      %p149 = por %p147, %p148
      %p150 = scmp.ne.s32.totalorder %s139, %s142
      %p151 = scmp.eq.s32.totalorder %s24, 1
      %p152 = por %p150, %p151
      %p153 = scmp.ne.s32.totalorder %s142, %s143
      %p154 = scmp.eq.s32.totalorder %s24, 0
      %p155 = por %p153, %p154
      %p156 = scmp.ne.s32.totalorder %s142, %s143
      %p157 = scmp.eq.s32.totalorder %s25, 1
      %p158 = por %p156, %p157
      %p160 = scmp.ne.s32.totalorder %s143, %s159
      %p161 = scmp.eq.s32.totalorder %s25, 0
      %p162 = por %p160, %p161
      %s163 = ssub.s32 %s26, %s38
      %s164 = ssub.s32 %s27, %s34
      %s165 = sor.u32 %s163, %s164
      %p166 = scmp.eq.s32.totalorder %s165, 0
      %s168 = sadd.s32 %s167, 1
      %s169 = scalar_select %p166, %s167, %s168
      %p172 = pneg %p166
      %p173 = scmp.eq.s32.totalorder %s19, 1
      %p174 = por %p172, %p173
      %p175 = scmp.ne.s32.totalorder %s167, %s170
      %p176 = scmp.eq.s32.totalorder %s19, 0
      %p177 = por %p175, %p176
      %p178 = scmp.ne.s32.totalorder %s167, %s170
      %p179 = scmp.eq.s32.totalorder %s24, 1
      %p180 = por %p178, %p179
      %p181 = scmp.ne.s32.totalorder %s170, %s171
      %p182 = scmp.eq.s32.totalorder %s24, 0
      %p183 = por %p181, %p182
      %p184 = scmp.ne.s32.totalorder %s170, %s171
      %p185 = scmp.eq.s32.totalorder %s25, 1
      %p186 = por %p184, %p185
      %p188 = scmp.ne.s32.totalorder %s171, %s187
      %p189 = scmp.eq.s32.totalorder %s25, 0
      %p190 = por %p188, %p189
      %p191 = scmp.le.s32.totalorder 1, %s19
      %p192 = scmp.lt.s32.totalorder %s19, 3
      %p193 = pnand %p191, %p192
      %p194 = pneg %p193
      // Predicated region
      $region9: #{tpu_custom_call.1} parent=5 // pred_check
        _
      $region10: #{tpu_custom_call.1} parent=5 // pred_check_branch
        %196 = sbr.rel (%p193) target = $region12
      $region11: #{tpu_custom_call.1} parent=5 // pred_region
        %s197 = ssub.s32 %s19, 1
        // Predicated region
        $region13: #{tpu_custom_call.1} parent=11 // pred_check
          %p198 = pneg %p52
        $region14: #{tpu_custom_call.1} parent=11 // pred_check_branch
          %200 = sbr.rel (%p198) target = $region16
        $region15: #{tpu_custom_call.1} parent=11 // pred_region
          %s202 = ssub.s32 128, 128
          %203 = vsyncadd [#allocation3], %s202
          %s205 = sshll.u32 [#allocation2], 4
          %s206 = int_to_ptr.vmem [resolvable:$true] %s205
          %208 = dma.hbm_to_vmem [thread:$0]  %s0, 128, %s206, [#allocation3]
        $region16: #{tpu_custom_call.1} parent=11 // pred_fallthru
          _
        // Predicated region
        $region17: #{tpu_custom_call.1} parent=11 // pred_check
          %p209 = pneg %p73
        $region18: #{tpu_custom_call.1} parent=11 // pred_check_branch
          %211 = sbr.rel (%p209) target = $region20
        $region19: #{tpu_custom_call.1} parent=11 // pred_region
          _
        $region20: #{tpu_custom_call.1} parent=11 // pred_fallthru
          _
        // Predicated region
        $region21: #{tpu_custom_call.1} parent=11 // pred_check
          %p212 = pneg %p99
        $region22: #{tpu_custom_call.1} parent=11 // pred_check_branch
          %214 = sbr.rel (%p212) target = $region24
        $region23: #{tpu_custom_call.1} parent=11 // pred_region
          %p215 = scmp.lt.s32.totalorder %s29, 0
          %s216 = scalar_select %p215, %s29, 0
          %s217 = scalar_lea.vmem %s2, %s216
        $region24: #{tpu_custom_call.1} parent=11 // pred_fallthru
          _
      $region12: #{tpu_custom_call.1} parent=5 // pred_fallthru
        _
      %p218 = scmp.lt.s32.totalorder %s19, 2
      // Predicated region
      $region25: #{tpu_custom_call.1} parent=5 // pred_check
        %p219 = pneg %p218
      $region26: #{tpu_custom_call.1} parent=5 // pred_check_branch
        %221 = sbr.rel (%p219) target = $region28
      $region27: #{tpu_custom_call.1} parent=5 // pred_region
        // Predicated region
        $region29: #{tpu_custom_call.1} parent=27 // pred_check
          %p222 = pneg %p121
        $region30: #{tpu_custom_call.1} parent=27 // pred_check_branch
          %224 = sbr.rel (%p222) target = $region32
        $region31: #{tpu_custom_call.1} parent=27 // pred_region
          %p225 = scmp.lt.s32.totalorder %s26, 1
          %s226 = scalar_select %p225, %s26, 1
          %p227 = scmp.lt.s32.totalorder %s27, 0
          %s228 = scalar_select %p227, %s27, 0
          %s229 = sadd.s32 %s228, %s226
          %s230 = smul.addr %s229, 8
          %s231 = scalar_lea.vmem %s3, %s230
        $region32: #{tpu_custom_call.1} parent=27 // pred_fallthru
          _
      $region28: #{tpu_custom_call.1} parent=5 // pred_fallthru
        _
      %p232 = scmp.le.s32.totalorder 1, %s19
      %p233 = scmp.lt.s32.totalorder %s19, 3
      %p234 = pnand %p232, %p233
      %p235 = pneg %p234
      // Predicated region
      $region33: #{tpu_custom_call.1} parent=5 // pred_check
        _
      $region34: #{tpu_custom_call.1} parent=5 // pred_check_branch
        %237 = sbr.rel (%p234) target = $region36
      $region35: #{tpu_custom_call.1} parent=5 // pred_region
        %s238 = ssub.s32 %s19, 1
        // Predicated region
        $region37: #{tpu_custom_call.1} parent=35 // pred_check
          %p239 = pneg %p52
        $region38: #{tpu_custom_call.1} parent=35 // pred_check_branch
          %241 = sbr.rel (%p239) target = $region40
        $region39: #{tpu_custom_call.1} parent=35 // pred_region
          %242 = dma.done [#allocation3], 128
        $region40: #{tpu_custom_call.1} parent=35 // pred_fallthru
          _
        %p243 = pneg %p52
        %p244 = pneg %p49
        %p245 = pneg %p73
        %p246 = pneg %p70
        %p247 = scmp.lt.s32.totalorder %s29, 0
        %s248 = scalar_select %p247, %s29, 0
        %s249 = scalar_lea.vmem %s2, %s248
        %p250 = pneg %p99
        %p251 = pneg %p96
        %p252 = scmp.lt.s32.totalorder %s28, 1
        %s253 = scalar_select %p252, %s28, 1
        %p254 = scmp.lt.s32.totalorder %s29, 0
        %s255 = scalar_select %p254, %s29, 0
        %s256 = sadd.s32 %s255, %s253
        %s257 = smul.addr %s256, 8
        %s258 = scalar_lea.vmem %s3, %s257
        %p259 = pneg %p127
        %p260 = pneg %p124
        %p261 = pneg %p155
        %p262 = pneg %p152
        %s263 = sand.u32 %s142, 1
        %s264 = scalar_lea.sflag [#allocation4], %s263
        %s265 = sand.u32 %s142, 1
        %s266 = smul.addr %s265, 8
        %s267 = scalar_lea.vmem [#allocation5], %s266
        %p268 = pneg %p183
        %p269 = pneg %p180
        %s270 = sand.u32 %s170, 1
        %s271 = scalar_lea.sflag [#allocation7], %s270
        %s272 = sand.u32 %s170, 1
        %s273 = smul.addr %s272, 8
        %s274 = scalar_lea.vmem [#allocation6], %s273
        %p275 = scmp.lt.s32.totalorder %s29, 0
        %s276 = scalar_select %p275, %s29, 0
        %s277 = scalar_lea.vmem %s2, %s276
        %p278 = scmp.lt.s32.totalorder %s28, 1
        %s279 = scalar_select %p278, %s28, 1
        %p280 = scmp.lt.s32.totalorder %s29, 0
        %s281 = scalar_select %p280, %s29, 0
        %s282 = sadd.s32 %s281, %s279
        %s283 = smul.addr %s282, 8
        %s284 = scalar_lea.vmem %s3, %s283
        %v285 = vld [vmem:[%s277] sm:$0x1]
        %v286 = vld [vmem:[#allocation2] sm:$0xff]
        %v287 = vld [vmem:[%s284] sm:$0xff]
        %v288 = vld [vmem:[%s1] sm:$0xff]
        %290 = vset.pattern.permute.xlu0 0
        %291 = vperm.xlu0 %290, %v288
        %v292 = vpop.permute.xlu0 %291
        %v295 = vlaneseq
        %v296 = vshrl.u32 %v295, 7
        %v297 = vsub.s32 0, %v296
        %v298 = vrot.slane %v285, %v297
        %v300 = vmul.f32 %v292, %v298
        %vm301 = vcmask 64512
        %v303 = vsel %vm301, %v286, 0
        %305 = vmatprep.subr.mxu0 0.0
        %306 = vmatpush1.msra.mxu0 %v287
        %307 = vmatprep.subr.mxu0 0.0
        %308 = vmatpush1.msra.mxu0 0.0
        %309 = vmatprep.subr.mxu0 0.0
        %310 = vmatpush1.msra.mxu0 0.0
        %311 = vmatprep.subr.mxu0 0.0
        %312 = vmatpush1.msra.mxu0 0.0
        %313 = vmatprep.subr.mxu0 0.0
        %314 = vmatpush1.msra.mxu0 0.0
        %315 = vmatprep.subr.mxu0 0.0
        %316 = vmatpush1.msra.mxu0 0.0
        %317 = vmatprep.subr.mxu0 0.0
        %318 = vmatpush1.msra.mxu0 0.0
        %319 = vmatprep.subr.mxu0 0.0
        %320 = vmatpush1.msra.mxu0 0.0
        %321 = vmatprep.subr.mxu0 0.0
        %322 = vmatpush1.msra.mxu0 0.0
        %323 = vmatprep.subr.mxu0 0.0
        %324 = vmatpush1.msra.mxu0 0.0
        %325 = vmatprep.subr.mxu0 0.0
        %326 = vmatpush1.msra.mxu0 0.0
        %327 = vmatprep.subr.mxu0 0.0
        %328 = vmatpush1.msra.mxu0 0.0
        %329 = vmatprep.subr.mxu0 0.0
        %330 = vmatpush1.msra.mxu0 0.0
        %331 = vmatprep.subr.mxu0 0.0
        %332 = vmatpush1.msra.mxu0 0.0
        %333 = vmatprep.subr.mxu0 0.0
        %334 = vmatpush1.msra.mxu0 0.0
        %335 = vmatprep.subr.mxu0 0.0
        %336 = vmatpush1.msra.mxu0 0.0
        %337 = vmatprep.subr.mxu0 0.0
        %338 = vmatpush1.msra.mxu0 0.0
        %339 = vmatprep.subr.mxu0 0.0
        %340 = vmatpush1.msra.mxu0 0.0
        %341 = vmatprep.subr.mxu0 0.0
        %342 = vmatpush1.msra.mxu0 0.0
        %343 = vmatprep.subr.mxu0 0.0
        %344 = vmatpush1.msra.mxu0 0.0
        %345 = vmatprep.subr.mxu0 0.0
        %346 = vmatpush1.msra.mxu0 0.0
        %347 = vmatprep.subr.mxu0 0.0
        %348 = vmatpush1.msra.mxu0 0.0
        %349 = vmatprep.subr.mxu0 0.0
        %350 = vmatpush1.msra.mxu0 0.0
        %351 = vmatprep.subr.mxu0 0.0
        %352 = vmatpush1.msra.mxu0 0.0
        %353 = vmatprep.subr.mxu0 0.0
        %354 = vmatpush1.msra.mxu0 0.0
        %355 = vmatprep.subr.mxu0 0.0
        %356 = vmatpush1.msra.mxu0 0.0
        %357 = vmatprep.subr.mxu0 0.0
        %358 = vmatpush1.msra.mxu0 0.0
        %359 = vmatprep.subr.mxu0 0.0
        %360 = vmatpush1.msra.mxu0 0.0
        %361 = vmatprep.subr.mxu0 0.0
        %362 = vmatpush1.msra.mxu0 0.0
        %363 = vmatprep.subr.mxu0 0.0
        %364 = vmatpush1.msra.mxu0 0.0
        %365 = vmatprep.subr.mxu0 0.0
        %366 = vmatpush1.msra.mxu0 0.0
        %367 = vmatprep.subr.mxu0 0.0
        %368 = vmatpush1.msra.mxu0 0.0
        %369 = vmatprep.mubr.f32.mxu0 0.0
        %370 = vmatmul.mubr.f32.gmra.mrb[0].mxu0 %v303
        %v371 = vpop.f32.mrb[0].mxu0
        %v372 = vadd.f32 %v300, %v371
        %v373 = vpop.f32.mrb[0].mxu0
        %374 = vdwg.mxu0
        %vm375 = vcmask 130048
        %376 = vst.msk [vmem:[%s267] sm:$0xff] %vm375, %v372
        %v377 = vsub.f32 %v372, %v298
        %378 = vst.msk [vmem:[%s274] sm:$0xff] %vm375, %v377
        %s379 = sand.u32 %s142, 1
        %s380 = scalar_lea.sflag [#allocation4], %s379
        %s381 = sand.u32 %s142, 1
        %s382 = smul.addr %s381, 8
        %s383 = scalar_lea.vmem [#allocation5], %s382
        %s384 = sand.u32 %s170, 1
        %s385 = scalar_lea.sflag [#allocation7], %s384
        %s386 = sand.u32 %s170, 1
        %s387 = smul.addr %s386, 8
        %s388 = scalar_lea.vmem [#allocation6], %s387
        // Predicated region
        $region41: #{tpu_custom_call.1} parent=35 // pred_check
          %p389 = pneg %p152
        $region42: #{tpu_custom_call.1} parent=35 // pred_check_branch
          %391 = sbr.rel (%p389) target = $region44
        $region43: #{tpu_custom_call.1} parent=35 // pred_region
          %s393 = ssub.s32 128, 128
          %394 = vsyncadd %s380, %s393
          %s395 = sadd.s32 %s29, %s28
          %s396 = smul.addr %s395, 128
          %s397 = scalar_lea.hbm %s4, %s396
          %s399 = sshll.u32 %s383, 4
          %s400 = int_to_ptr.vmem [resolvable:$true] %s399
          %402 = dma.vmem_to_hbm [thread:$0]  %s400, 128, %s397, %s380
        $region44: #{tpu_custom_call.1} parent=35 // pred_fallthru
          _
        // Predicated region
        $region45: #{tpu_custom_call.1} parent=35 // pred_check
          %p403 = pneg %p180
        $region46: #{tpu_custom_call.1} parent=35 // pred_check_branch
          %405 = sbr.rel (%p403) target = $region48
        $region47: #{tpu_custom_call.1} parent=35 // pred_region
          %s407 = ssub.s32 128, 128
          %408 = vsyncadd %s385, %s407
          %s409 = sadd.s32 %s29, %s28
          %s410 = smul.addr %s409, 128
          %s411 = scalar_lea.hbm %s5, %s410
          %s413 = sshll.u32 %s388, 4
          %s414 = int_to_ptr.vmem [resolvable:$true] %s413
          %416 = dma.vmem_to_hbm [thread:$0]  %s414, 128, %s411, %s385
        $region48: #{tpu_custom_call.1} parent=35 // pred_fallthru
          _
      $region36: #{tpu_custom_call.1} parent=5 // pred_fallthru
        _
      %p417 = scmp.le.s32.totalorder 2, %s19
      // Predicated region
      $region49: #{tpu_custom_call.1} parent=5 // pred_check
        %p418 = pneg %p417
      $region50: #{tpu_custom_call.1} parent=5 // pred_check_branch
        %420 = sbr.rel (%p418) target = $region52
      $region51: #{tpu_custom_call.1} parent=5 // pred_region
        %s421 = ssub.s32 %s19, 2
        // Predicated region
        $region53: #{tpu_custom_call.1} parent=51 // pred_check
          %p422 = pneg %p158
        $region54: #{tpu_custom_call.1} parent=51 // pred_check_branch
          %424 = sbr.rel (%p422) target = $region56
        $region55: #{tpu_custom_call.1} parent=51 // pred_region
          %s425 = sand.u32 %s143, 1
          %s426 = scalar_lea.sflag [#allocation4], %s425
          %s427 = sand.u32 %s143, 1
          %s428 = smul.addr %s427, 8
          %s429 = scalar_lea.vmem [#allocation5], %s428
          %430 = dma.done %s426, 128
        $region56: #{tpu_custom_call.1} parent=51 // pred_fallthru
          _
        // Predicated region
        $region57: #{tpu_custom_call.1} parent=51 // pred_check
          %p431 = pneg %p186
        $region58: #{tpu_custom_call.1} parent=51 // pred_check_branch
          %433 = sbr.rel (%p431) target = $region60
        $region59: #{tpu_custom_call.1} parent=51 // pred_region
          %s434 = sand.u32 %s171, 1
          %s435 = scalar_lea.sflag [#allocation7], %s434
          %s436 = sand.u32 %s171, 1
          %s437 = smul.addr %s436, 8
          %s438 = scalar_lea.vmem [#allocation6], %s437
          %439 = dma.done %s435, 128
        $region60: #{tpu_custom_call.1} parent=51 // pred_fallthru
          _
      $region52: #{tpu_custom_call.1} parent=5 // pred_fallthru
        _
    $region6: #{tpu_custom_call.1} parent=1 // loop_footer
      %s23 = sadd.s32 1, %s19
    $region7: #{tpu_custom_call.1} parent=1 // loop_footer_branch
      %18 = sbr.rel target = $region3
    $region8: #{tpu_custom_call.1} parent=1 // loop_exit
      _
    %440 = vsyncpa [#allocation3], 1
    %s441 = scalar_lea.sflag [#allocation3], 1
    %442 = vsyncpa %s441, 1
    %443 = vsyncpa [#allocation4], 1
    %s444 = scalar_lea.sflag [#allocation4], 1
    %445 = vsyncpa %s444, 1
    %446 = vsyncpa [#allocation7], 1
    %s447 = scalar_lea.sflag [#allocation7], 1
    %448 = vsyncpa %s447, 1

</llo_original>
